<compile_context>
chip_gen: v7x
topology: tpu7x:2x2x1
jax: 0.10.0
libtpu: 0.0.40
codegen_flags: <defaults>
</compile_context>

<pallas_src>
import functools
import math

import jax
import jax.numpy as jnp
from jax.experimental import pallas as pl
from jax.experimental.pallas import tpu as pltpu


_VMEM_LIMIT = 48 * 1024 * 1024  # explicit scoped-VMEM budget; leaves headroom on v7x (64 MiB physical)


def _round_up(n, m):
    return ((n + m - 1) // m) * m


# --------------------------------------------------------------------------------------
# Kernels
# --------------------------------------------------------------------------------------
def _proj_kernel(x_ref, w_ref, a2_ref, h_ref, e2_ref):
    """Per row-tile: h = x @ W ; e2 = h @ [a_src | a_dst] (rank-1 logit terms)."""
    h = jnp.dot(x_ref[...], w_ref[...], preferred_element_type=jnp.float32)
    h_ref[...] = h
    e2_ref[...] = jnp.dot(h, a2_ref[...], preferred_element_type=jnp.float32)


def _gat_attn_kernel(e_src_ref, e_dst_ref, adj_ref, h_ref, out_ref,
                     m_sc, l_sc, acc_sc, *, alpha, apply_elu):
    """Flash-style GAT attention tile: online softmax over key tiles, att @ h on the MXU."""
    j = pl.program_id(1)

    @pl.when(j == 0)
    def _init():
        m_sc[...] = jnp.full_like(m_sc, -jnp.inf)
        l_sc[...] = jnp.zeros_like(l_sc)
        acc_sc[...] = jnp.zeros_like(acc_sc)

    # Rank-1 logits + LeakyReLU + adjacency mask (pure VPU work, no matmul).
    e = e_src_ref[...] + e_dst_ref[...]                       # (tq,1)+(1,tk) -> (tq,tk)
    e = jnp.where(e > 0, e, jnp.float32(alpha) * e)           # LeakyReLU(alpha)
    e = jnp.where(adj_ref[...] != 0, e, jnp.float32(-9e15))   # same sentinel as PyTorch

    # Online softmax update.
    m_prev = m_sc[...]
    m_new = jnp.maximum(m_prev, jnp.max(e, axis=1, keepdims=True))
    corr = jnp.exp(m_prev - m_new)
    p = jnp.exp(e - m_new)                                    # (tq,tk)
    l_sc[...] = corr * l_sc[...] + jnp.sum(p, axis=1, keepdims=True)
    acc_sc[...] = corr * acc_sc[...] + jnp.dot(
        p.astype(h_ref.dtype), h_ref[...], preferred_element_type=jnp.float32)
    m_sc[...] = m_new

    @pl.when(j == pl.num_programs(1) - 1)
    def _finalize():
        inv_l = pl.reciprocal(l_sc[...], approx=True)         # EUP slot, ~free
        hp = acc_sc[...] * inv_l
        if apply_elu:                                         # concat=True -> ELU (alpha=1.0)
            hp = jnp.where(hp > 0, hp, jnp.expm1(hp))
        out_ref[...] = hp.astype(out_ref.dtype)


# --------------------------------------------------------------------------------------
# Wrapper
# --------------------------------------------------------------------------------------
def graph_attention_layer(x, adj, W, a, *, alpha, concat=True,
                          block_q=256, block_k=512, mxu_dtype=jnp.float32):
    """Pallas GAT layer. x:(N,Fin) adj:(N,N) W:(Fin,Fout) a:(2*Fout,1) -> (N,Fout)."""
    N, Fin = x.shape
    Fout = W.shape[1]
    assert a.shape == (2 * Fout, 1)
    assert block_q % 8 == 0 and block_k % 128 == 0

    f32 = jnp.float32
    f_pad = _round_up(Fout, 128)  # lane-dense h / out

    # Tile / padding selection: n_pad divisible by both tile sizes, tiles satisfy (8,128) rules.
    if N > block_k:
        n_pad = _round_up(N, math.lcm(block_q, block_k))
        tq, tk = block_q, block_k
    else:
        n_pad = _round_up(N, 128)
        tq = block_q if n_pad % block_q == 0 else n_pad
        tk = n_pad
    tp = 512 if n_pad % 512 == 0 else (256 if n_pad % 256 == 0 else 128)  # projection row tile

    # Padded operands (zero padding is inert: padded h rows are 0, padded adj entries are masked).
    x_p = jnp.zeros((n_pad, Fin), f32).at[:N, :].set(x.astype(f32))
    W_p = jnp.zeros((Fin, f_pad), f32).at[:, :Fout].set(W.astype(f32))
    a2 = jnp.zeros((f_pad, 2), f32)
    a2 = a2.at[:Fout, 0].set(a[:Fout, 0].astype(f32))
    a2 = a2.at[:Fout, 1].set(a[Fout:, 0].astype(f32))
    adj_p = jnp.zeros((n_pad, n_pad), jnp.int8).at[:N, :N].set((adj > 0).astype(jnp.int8))

    # ---- prologue: h = x @ W, rank-1 logit terms (hoisted out of the attention loop) ----
    h, e2 = pl.pallas_call(
        _proj_kernel,
        out_shape=(jax.ShapeDtypeStruct((n_pad, f_pad), f32),
                   jax.ShapeDtypeStruct((n_pad, 2), f32)),
        grid_spec=pltpu.PrefetchScalarGridSpec(
            num_scalar_prefetch=0,
            grid=(n_pad // tp,),
            in_specs=[pl.BlockSpec((tp, Fin), lambda i: (i, 0)),
                      pl.BlockSpec((Fin, f_pad), lambda i: (0, 0)),
                      pl.BlockSpec((f_pad, 2), lambda i: (0, 0))],
            out_specs=(pl.BlockSpec((tp, f_pad), lambda i: (i, 0)),
                       pl.BlockSpec((tp, 2), lambda i: (i, 0)))),
        compiler_params=pltpu.CompilerParams(
            dimension_semantics=("parallel",),
            vmem_limit_bytes=_VMEM_LIMIT),
        cost_estimate=pl.CostEstimate(
            flops=2 * n_pad * Fin * f_pad + 4 * n_pad * f_pad,
            transcendentals=0,
            bytes_accessed=4 * (n_pad * Fin + Fin * f_pad + n_pad * f_pad + 2 * n_pad)),
    )(x_p, W_p, a2)

    e_src = e2[:, 0:1]          # (n_pad, 1)  column layout, one block per query tile
    e_dst = e2[:, 1:2].T        # (1, n_pad)  lane-major row, one-time transpose (no per-tile XLU)
    h_mm = h.astype(mxu_dtype)  # optional bf16 streaming of key tiles (halves h DMA)
    h_bytes = jnp.dtype(mxu_dtype).itemsize

    kernel = functools.partial(_gat_attn_kernel, alpha=float(alpha), apply_elu=bool(concat))
    out_p = pl.pallas_call(
        kernel,
        out_shape=jax.ShapeDtypeStruct((n_pad, f_pad), f32),
        grid_spec=pltpu.PrefetchScalarGridSpec(
            num_scalar_prefetch=0,
            grid=(n_pad // tq, n_pad // tk),
            in_specs=[pl.BlockSpec((tq, 1), lambda i, j: (i, 0)),       # e_src (query tile)
                      pl.BlockSpec((1, tk), lambda i, j: (0, j)),       # e_dst (key tile, row)
                      pl.BlockSpec((tq, tk), lambda i, j: (i, j)),      # adj tile (int8)
                      pl.BlockSpec((tk, f_pad), lambda i, j: (j, 0))],  # h key tile
            out_specs=pl.BlockSpec((tq, f_pad), lambda i, j: (i, 0)),   # accumulator output
            scratch_shapes=[pltpu.VMEM((tq, 1), f32),       # running max m
                            pltpu.VMEM((tq, 1), f32),       # running sum l
                            pltpu.VMEM((tq, f_pad), f32)]), # f32 accumulator
        compiler_params=pltpu.CompilerParams(
            dimension_semantics=("parallel", "arbitrary"),
            vmem_limit_bytes=_VMEM_LIMIT),
        cost_estimate=pl.CostEstimate(
            flops=2 * n_pad * n_pad * f_pad + 10 * n_pad * n_pad,
            transcendentals=n_pad * n_pad + 2 * n_pad * f_pad,
            bytes_accessed=(n_pad * n_pad                               # adj (int8)
                            + (n_pad // tq) * n_pad * f_pad * h_bytes   # h re-streamed per row tile
                            + 4 * n_pad * f_pad + 8 * n_pad)),
    )(e_src, e_dst, adj_p, h_mm)

    return out_p[:N, :Fout]


# --------------------------------------------------------------------------------------
# Pure-JAX reference (mirrors the PyTorch forward in eval mode)
# --------------------------------------------------------------------------------------
def _reference(x, adj, W, a, alpha, concat=True):
    h = x @ W
    F = h.shape[1]
    e = h @ a[:F] + (h @ a[F:]).T
    e = jnp.where(e > 0, e, alpha * e)
    att = jnp.where(adj > 0, e, jnp.float32(-9e15))
    att = jax.nn.softmax(att, axis=1)
    hp = att @ h
    return jnp.where(hp > 0, hp, jnp.expm1(hp)) if concat else hp


if __name__ == "__main__":
    key = jax.random.PRNGKey(0)

    def make_case(k, N, Fin, Fout):
        k1, k2, k3, k4 = jax.random.split(k, 4)
        gain = 1.414  # xavier_uniform with gain=1.414, as in the module __init__
        bw = gain * (6.0 / (Fin + Fout)) ** 0.5
        W = jax.random.uniform(k1, (Fin, Fout), jnp.float32, -bw, bw)
        ba = gain * (6.0 / (2 * Fout + 1)) ** 0.5
        a = jax.random.uniform(k2, (2 * Fout, 1), jnp.float32, -ba, ba)
        x = jax.random.normal(k3, (N, Fin), jnp.float32)
        adj = (jax.random.uniform(k4, (N, N)) > 0.5).astype(jnp.float32)
        adj = jnp.maximum(adj, jnp.eye(N, dtype=jnp.float32))  # self loops
        return x, adj, W, a

    alpha = 0.2
    k1, k2 = jax.random.split(key)

    # Case 1: nominal small shapes (N=8, Fin=16, Fout=32), single-tile grid, concat=True (ELU).
    x, adj, W, a = make_case(k1, N=8, Fin=16, Fout=32)
    out = jax.block_until_ready(graph_attention_layer(x, adj, W, a, alpha=alpha, concat=True))
    ref = _reference(x, adj, W, a, alpha, concat=True)
    assert out.shape == ref.shape
    # tolerance accounts for the EUP approx-reciprocal used in the softmax finalize
    assert jnp.allclose(out, ref, atol=2e-3, rtol=2e-3), "case 1 mismatch vs reference"

    # Case 2: multi-tile flash path (grid 4x2 over query/key tiles), concat=False (no ELU).
    x, adj, W, a = make_case(k2, N=200, Fin=24, Fout=48)
    out = jax.block_until_ready(
        graph_attention_layer(x, adj, W, a, alpha=alpha, concat=False, block_q=64, block_k=128))
    ref = _reference(x, adj, W, a, alpha, concat=False)
    assert out.shape == ref.shape
    assert jnp.allclose(out, ref, atol=2e-3, rtol=2e-3), "case 2 mismatch vs reference"

    print("KERNEL_OK")
</pallas_src>

<mosaic_0001>
module attributes {stable_mosaic.version = 11 : i64} {
  func.func @_proj_kernel(%arg0: i32, %arg1: memref<128x16xf32, #tpu.memory_space<vmem>>, %arg2: memref<16x128xf32, #tpu.memory_space<vmem>>, %arg3: memref<128x2xf32, #tpu.memory_space<vmem>>, %arg4: memref<128x128xf32, #tpu.memory_space<vmem>>, %arg5: memref<128x2xf32, #tpu.memory_space<vmem>>) attributes {dimension_semantics = [#tpu.dimension_semantics<parallel>], iteration_bounds = array<i64: 1>, scalar_prefetch = 0 : i64, scratch_operands = 0 : i64, tpu.core_type = #tpu.core_type<tc>, window_params = [{transform_indices = @transform_0, window_bounds = array<i64: 128, 16>}, {pipeline_mode = #tpu.pipeline_mode<synchronous>, transform_indices = @transform_1, window_bounds = array<i64: 16, 128>}, {pipeline_mode = #tpu.pipeline_mode<synchronous>, transform_indices = @transform_2, window_bounds = array<i64: 128, 2>}, {transform_indices = @transform_3, window_bounds = array<i64: 128, 128>}, {transform_indices = @transform_4, window_bounds = array<i64: 128, 2>}]} {
    %c0 = arith.constant 0 : index
    %c0_0 = arith.constant 0 : index
    %0 = vector.load %arg1[%c0, %c0_0] : memref<128x16xf32, #tpu.memory_space<vmem>>, vector<128x16xf32>
    %c0_1 = arith.constant 0 : index
    %c0_2 = arith.constant 0 : index
    %1 = vector.load %arg2[%c0_1, %c0_2] : memref<16x128xf32, #tpu.memory_space<vmem>>, vector<16x128xf32>
    %cst = arith.constant dense<0.000000e+00> : vector<128x128xf32>
    %2 = tpu.matmul %0, %1, %cst {dimension_numbers = #tpu.dot_dimension_numbers<[1], [0], [0], [1], [0, 0, 1, 1], [], []>} : vector<128x16xf32>, vector<16x128xf32>, vector<128x128xf32> -> vector<128x128xf32>
    %c0_3 = arith.constant 0 : index
    %c0_4 = arith.constant 0 : index
    %3 = vector.load %arg4[%c0_3, %c0_4] : memref<128x128xf32, #tpu.memory_space<vmem>>, vector<128x128xf32>
    tpu.vector_store %arg4[%c0_3, %c0_4], %2 {strides = array<i32>} : memref<128x128xf32, #tpu.memory_space<vmem>>, vector<128x128xf32>,
    %c0_5 = arith.constant 0 : index
    %c0_6 = arith.constant 0 : index
    %4 = vector.load %arg3[%c0_5, %c0_6] : memref<128x2xf32, #tpu.memory_space<vmem>>, vector<128x2xf32>
    %cst_7 = arith.constant dense<0.000000e+00> : vector<128x2xf32>
    %5 = tpu.matmul %2, %4, %cst_7 {dimension_numbers = #tpu.dot_dimension_numbers<[1], [0], [0], [1], [0, 0, 1, 1], [], []>} : vector<128x128xf32>, vector<128x2xf32>, vector<128x2xf32> -> vector<128x2xf32>
    %c0_8 = arith.constant 0 : index
    %c0_9 = arith.constant 0 : index
    %6 = vector.load %arg5[%c0_8, %c0_9] : memref<128x2xf32, #tpu.memory_space<vmem>>, vector<128x2xf32>
    tpu.vector_store %arg5[%c0_8, %c0_9], %5 {strides = array<i32>} : memref<128x2xf32, #tpu.memory_space<vmem>>, vector<128x2xf32>,
    return
  }
  func.func @transform_0(%arg0: i32) -> (i32, i32) {
    %c0_i32 = arith.constant 0 : i32
    %c0_i32_0 = arith.constant 0 : i32
    return %arg0, %c0_i32 : i32, i32
  }
  func.func @transform_1(%arg0: i32) -> (i32, i32) {
    %c0_i32 = arith.constant 0 : i32
    %c0_i32_0 = arith.constant 0 : i32
    %c0_i32_1 = arith.constant 0 : i32
    return %c0_i32, %c0_i32_0 : i32, i32
  }
  func.func @transform_2(%arg0: i32) -> (i32, i32) {
    %c0_i32 = arith.constant 0 : i32
    %c0_i32_0 = arith.constant 0 : i32
    %c0_i32_1 = arith.constant 0 : i32
    return %c0_i32, %c0_i32_0 : i32, i32
  }
  func.func @transform_3(%arg0: i32) -> (i32, i32) {
    %c0_i32 = arith.constant 0 : i32
    %c0_i32_0 = arith.constant 0 : i32
    return %arg0, %c0_i32 : i32, i32
  }
  func.func @transform_4(%arg0: i32) -> (i32, i32) {
    %c0_i32 = arith.constant 0 : i32
    %c0_i32_0 = arith.constant 0 : i32
    return %arg0, %c0_i32 : i32, i32
  }
}

</mosaic_0001>

<llo_original>
// kernel: tpu_custom_call.1
$region0: #{tpu_custom_call.1}
  #allocation0 [shape = 'u32[]', space=smem, size = 0x4, offset = 0x4, fixed_abs, tag = 'smem constant byte address 0x4 - core index']
  #allocation1 [shape = 'u32[144,128]{1,0:T(1,128)}', space=vmem, size = 0x12000, scoped, tag = 'internal scratch']
  %s0 = inlined_call_operand.vmem [shape: f32[128,16], index: 0, kind: input, shape index: {}]
  %s1 = inlined_call_operand.vmem [shape: f32[16,128], index: 1, kind: input, shape index: {}]
  %s2 = inlined_call_operand.vmem [shape: f32[128,2], index: 2, kind: input, shape index: {}]
  %s3 = inlined_call_operand.hbm [shape: f32[128,128], index: 3, kind: output, shape index: {0}]
  %s4 = inlined_call_operand.vmem [shape: f32[128,2], index: 4, kind: output, shape index: {1}]
  %5 = xla_tuple %s3, %s4
  %s6 = sld [smem:[#allocation0]]
  $region30: #{tpu_custom_call.1} parent=0
    _
  %s8 = ssub.s32 1, %s6
  %s9 = scalar_select 0, %s8, %s6
  $region1: #{tpu_custom_call.1} parent=0
    #allocation2 [shape = 'u8[65536]{0}', space=vmem, size = 0x10000, scoped, tag = 'output window, operand 0, single buffered']
    #allocation3 [shape = 's32[1]{0}', space=sflag, size = 0x4, scoped, tag = 'scoped memory for tpu_custom_call.1']
    %10 = vsyncpa [#allocation3], 0
    // Predicated region
    $region2: #{tpu_custom_call.1} parent=1 // pred_check
      _
    $region3: #{tpu_custom_call.1} parent=1 // pred_check_branch
      %12 = sbr.rel (0) target = $region5
    $region4: #{tpu_custom_call.1} parent=1 // pred_region
      _
    $region5: #{tpu_custom_call.1} parent=1 // pred_fallthru
      _
    // Predicated region
    $region6: #{tpu_custom_call.1} parent=1 // pred_check
      _
    $region7: #{tpu_custom_call.1} parent=1 // pred_check_branch
      %14 = sbr.rel (0) target = $region9
    $region8: #{tpu_custom_call.1} parent=1 // pred_region
      _
    $region9: #{tpu_custom_call.1} parent=1 // pred_fallthru
      _
    // Predicated region
    $region10: #{tpu_custom_call.1} parent=1 // pred_check
      _
    $region11: #{tpu_custom_call.1} parent=1 // pred_check_branch
      %16 = sbr.rel (0) target = $region13
    $region12: #{tpu_custom_call.1} parent=1 // pred_region
      _
    $region13: #{tpu_custom_call.1} parent=1 // pred_fallthru
      _
    %v17 = vld [vmem:[%s0] sm:$0xff]
    %v18 = vld [vmem:[%s0 + $0x8] sm:$0xff]
    %v19 = vld [vmem:[%s0 + $0x10] sm:$0xff]
    %v20 = vld [vmem:[%s0 + $0x18] sm:$0xff]
    %v21 = vld [vmem:[%s0 + $0x20] sm:$0xff]
    %v22 = vld [vmem:[%s0 + $0x28] sm:$0xff]
    %v23 = vld [vmem:[%s0 + $0x30] sm:$0xff]
    %v24 = vld [vmem:[%s0 + $0x38] sm:$0xff]
    %v25 = vld [vmem:[%s0 + $0x40] sm:$0xff]
    %v26 = vld [vmem:[%s0 + $0x48] sm:$0xff]
    %v27 = vld [vmem:[%s0 + $0x50] sm:$0xff]
    %v28 = vld [vmem:[%s0 + $0x58] sm:$0xff]
    %v29 = vld [vmem:[%s0 + $0x60] sm:$0xff]
    %v30 = vld [vmem:[%s0 + $0x68] sm:$0xff]
    %v31 = vld [vmem:[%s0 + $0x70] sm:$0xff]
    %v32 = vld [vmem:[%s0 + $0x78] sm:$0xff]
    %v33 = vld [vmem:[%s1] sm:$0xff]
    %v34 = vld [vmem:[%s1 + $0x8] sm:$0xff]
    %vm35 = vcmask 130048
    %v37 = vsel %vm35, %v17, 0
    %v40 = vsel %vm35, %v18, 0
    %v43 = vsel %vm35, %v19, 0
    %v46 = vsel %vm35, %v20, 0
    %v49 = vsel %vm35, %v21, 0
    %v52 = vsel %vm35, %v22, 0
    %v55 = vsel %vm35, %v23, 0
    %v58 = vsel %vm35, %v24, 0
    %v61 = vsel %vm35, %v25, 0
    %v64 = vsel %vm35, %v26, 0
    %v67 = vsel %vm35, %v27, 0
    %v70 = vsel %vm35, %v28, 0
    %v73 = vsel %vm35, %v29, 0
    %v76 = vsel %vm35, %v30, 0
    %v79 = vsel %vm35, %v31, 0
    %v82 = vsel %vm35, %v32, 0
    %84 = vmatprep.subr.mxu0 0.0
    %85 = vmatpush1.msra.mxu0 %v33
    %86 = vmatprep.subr.mxu0 0.0
    %87 = vmatpush1.msra.mxu0 %v34
    %88 = vmatprep.subr.mxu0 0.0
    %89 = vmatpush1.msra.mxu0 0.0
    %90 = vmatprep.subr.mxu0 0.0
    %91 = vmatpush1.msra.mxu0 0.0
    %92 = vmatprep.subr.mxu0 0.0
    %93 = vmatpush1.msra.mxu0 0.0
    %94 = vmatprep.subr.mxu0 0.0
    %95 = vmatpush1.msra.mxu0 0.0
    %96 = vmatprep.subr.mxu0 0.0
    %97 = vmatpush1.msra.mxu0 0.0
    %98 = vmatprep.subr.mxu0 0.0
    %99 = vmatpush1.msra.mxu0 0.0
    %100 = vmatprep.subr.mxu0 0.0
    %101 = vmatpush1.msra.mxu0 0.0
    %102 = vmatprep.subr.mxu0 0.0
    %103 = vmatpush1.msra.mxu0 0.0
    %104 = vmatprep.subr.mxu0 0.0
    %105 = vmatpush1.msra.mxu0 0.0
    %106 = vmatprep.subr.mxu0 0.0
    %107 = vmatpush1.msra.mxu0 0.0
    %108 = vmatprep.subr.mxu0 0.0
    %109 = vmatpush1.msra.mxu0 0.0
    %110 = vmatprep.subr.mxu0 0.0
    %111 = vmatpush1.msra.mxu0 0.0
    %112 = vmatprep.subr.mxu0 0.0
    %113 = vmatpush1.msra.mxu0 0.0
    %114 = vmatprep.subr.mxu0 0.0
    %115 = vmatpush1.msra.mxu0 0.0
    %116 = vmatprep.subr.mxu0 0.0
    %117 = vmatpush1.msra.mxu0 0.0
    %118 = vmatprep.subr.mxu0 0.0
    %119 = vmatpush1.msra.mxu0 0.0
    %120 = vmatprep.subr.mxu0 0.0
    %121 = vmatpush1.msra.mxu0 0.0
    %122 = vmatprep.subr.mxu0 0.0
    %123 = vmatpush1.msra.mxu0 0.0
    %124 = vmatprep.subr.mxu0 0.0
    %125 = vmatpush1.msra.mxu0 0.0
    %126 = vmatprep.subr.mxu0 0.0
    %127 = vmatpush1.msra.mxu0 0.0
    %128 = vmatprep.subr.mxu0 0.0
    %129 = vmatpush1.msra.mxu0 0.0
    %130 = vmatprep.subr.mxu0 0.0
    %131 = vmatpush1.msra.mxu0 0.0
    %132 = vmatprep.subr.mxu0 0.0
    %133 = vmatpush1.msra.mxu0 0.0
    %134 = vmatprep.subr.mxu0 0.0
    %135 = vmatpush1.msra.mxu0 0.0
    %136 = vmatprep.subr.mxu0 0.0
    %137 = vmatpush1.msra.mxu0 0.0
    %138 = vmatprep.subr.mxu0 0.0
    %139 = vmatpush1.msra.mxu0 0.0
    %140 = vmatprep.subr.mxu0 0.0
    %141 = vmatpush1.msra.mxu0 0.0
    %142 = vmatprep.subr.mxu0 0.0
    %143 = vmatpush1.msra.mxu0 0.0
    %144 = vmatprep.subr.mxu0 0.0
    %145 = vmatpush1.msra.mxu0 0.0
    %146 = vmatprep.subr.mxu0 0.0
    %147 = vmatpush1.msra.mxu0 0.0
    %148 = vmatprep.mubr.f32.mxu0 0.0
    %149 = vmatmul.mubr.f32.gmra.mrb[0].mxu0 %v37
    %v150 = vpop.f32.mrb[0].mxu0
    %v151 = vadd.f32 0.0, %v150
    %v152 = vpop.f32.mrb[0].mxu0
    %153 = vmatprep.mubr.f32.mxu0 0.0
    %154 = vmatmul.mubr.f32.gmra.mrb[0].mxu0 %v40
    %v155 = vpop.f32.mrb[0].mxu0
    %v156 = vadd.f32 0.0, %v155
    %v157 = vpop.f32.mrb[0].mxu0
    %158 = vmatprep.mubr.f32.mxu0 0.0
    %159 = vmatmul.mubr.f32.gmra.mrb[0].mxu0 %v43
    %v160 = vpop.f32.mrb[0].mxu0
    %v161 = vadd.f32 0.0, %v160
    %v162 = vpop.f32.mrb[0].mxu0
    %163 = vmatprep.mubr.f32.mxu0 0.0
    %164 = vmatmul.mubr.f32.gmra.mrb[0].mxu0 %v46
    %v165 = vpop.f32.mrb[0].mxu0
    %v166 = vadd.f32 0.0, %v165
    %v167 = vpop.f32.mrb[0].mxu0
    %168 = vmatprep.mubr.f32.mxu0 0.0
    %169 = vmatmul.mubr.f32.gmra.mrb[0].mxu0 %v49
    %v170 = vpop.f32.mrb[0].mxu0
    %v171 = vadd.f32 0.0, %v170
    %v172 = vpop.f32.mrb[0].mxu0
    %173 = vmatprep.mubr.f32.mxu0 0.0
    %174 = vmatmul.mubr.f32.gmra.mrb[0].mxu0 %v52
    %v175 = vpop.f32.mrb[0].mxu0
    %v176 = vadd.f32 0.0, %v175
    %v177 = vpop.f32.mrb[0].mxu0
    %178 = vmatprep.mubr.f32.mxu0 0.0
    %179 = vmatmul.mubr.f32.gmra.mrb[0].mxu0 %v55
    %v180 = vpop.f32.mrb[0].mxu0
    %v181 = vadd.f32 0.0, %v180
    %v182 = vpop.f32.mrb[0].mxu0
    %183 = vmatprep.mubr.f32.mxu0 0.0
    %184 = vmatmul.mubr.f32.gmra.mrb[0].mxu0 %v58
    %v185 = vpop.f32.mrb[0].mxu0
    %v186 = vadd.f32 0.0, %v185
    %v187 = vpop.f32.mrb[0].mxu0
    %188 = vmatprep.mubr.f32.mxu0 0.0
    %189 = vmatmul.mubr.f32.gmra.mrb[0].mxu0 %v61
    %v190 = vpop.f32.mrb[0].mxu0
    %v191 = vadd.f32 0.0, %v190
    %v192 = vpop.f32.mrb[0].mxu0
    %193 = vmatprep.mubr.f32.mxu0 0.0
    %194 = vmatmul.mubr.f32.gmra.mrb[0].mxu0 %v64
    %v195 = vpop.f32.mrb[0].mxu0
    %v196 = vadd.f32 0.0, %v195
    %v197 = vpop.f32.mrb[0].mxu0
    %198 = vmatprep.mubr.f32.mxu0 0.0
    %199 = vmatmul.mubr.f32.gmra.mrb[0].mxu0 %v67
    %v200 = vpop.f32.mrb[0].mxu0
    %v201 = vadd.f32 0.0, %v200
    %v202 = vpop.f32.mrb[0].mxu0
    %203 = vmatprep.mubr.f32.mxu0 0.0
    %204 = vmatmul.mubr.f32.gmra.mrb[0].mxu0 %v70
    %v205 = vpop.f32.mrb[0].mxu0
    %v206 = vadd.f32 0.0, %v205
    %v207 = vpop.f32.mrb[0].mxu0
    %208 = vmatprep.mubr.f32.mxu0 0.0
    %209 = vmatmul.mubr.f32.gmra.mrb[0].mxu0 %v73
    %v210 = vpop.f32.mrb[0].mxu0
    %v211 = vadd.f32 0.0, %v210
    %v212 = vpop.f32.mrb[0].mxu0
    %213 = vmatprep.mubr.f32.mxu0 0.0
    %214 = vmatmul.mubr.f32.gmra.mrb[0].mxu0 %v76
    %v215 = vpop.f32.mrb[0].mxu0
    %v216 = vadd.f32 0.0, %v215
    %v217 = vpop.f32.mrb[0].mxu0
    %218 = vmatprep.mubr.f32.mxu0 0.0
    %219 = vmatmul.mubr.f32.gmra.mrb[0].mxu0 %v79
    %v220 = vpop.f32.mrb[0].mxu0
    %v221 = vadd.f32 0.0, %v220
    %v222 = vpop.f32.mrb[0].mxu0
    %223 = vmatprep.mubr.f32.mxu0 0.0
    %224 = vmatmul.mubr.f32.gmra.mrb[0].mxu0 %v82
    %v225 = vpop.f32.mrb[0].mxu0
    %v226 = vadd.f32 0.0, %v225
    %v227 = vpop.f32.mrb[0].mxu0
    %228 = vdwg.mxu0
    %229 = vst [vmem:[#allocation2] sm:$0xff] %v151
    %230 = vst [vmem:[#allocation2 + $0x8] sm:$0xff] %v156
    %231 = vst [vmem:[#allocation2 + $0x10] sm:$0xff] %v161
    %232 = vst [vmem:[#allocation2 + $0x18] sm:$0xff] %v166
    %233 = vst [vmem:[#allocation2 + $0x20] sm:$0xff] %v171
    %234 = vst [vmem:[#allocation2 + $0x28] sm:$0xff] %v176
    %235 = vst [vmem:[#allocation2 + $0x30] sm:$0xff] %v181
    %236 = vst [vmem:[#allocation2 + $0x38] sm:$0xff] %v186
    %237 = vst [vmem:[#allocation2 + $0x40] sm:$0xff] %v191
    %238 = vst [vmem:[#allocation2 + $0x48] sm:$0xff] %v196
    %239 = vst [vmem:[#allocation2 + $0x50] sm:$0xff] %v201
    %240 = vst [vmem:[#allocation2 + $0x58] sm:$0xff] %v206
    %241 = vst [vmem:[#allocation2 + $0x60] sm:$0xff] %v211
    %242 = vst [vmem:[#allocation2 + $0x68] sm:$0xff] %v216
    %243 = vst [vmem:[#allocation2 + $0x70] sm:$0xff] %v221
    %244 = vst [vmem:[#allocation2 + $0x78] sm:$0xff] %v226
    %v245 = vld [vmem:[%s2] sm:$0xff]
    %v246 = vld [vmem:[%s2 + $0x8] sm:$0xff]
    %v247 = vld [vmem:[%s2 + $0x10] sm:$0xff]
    %v248 = vld [vmem:[%s2 + $0x18] sm:$0xff]
    %v249 = vld [vmem:[%s2 + $0x20] sm:$0xff]
    %v250 = vld [vmem:[%s2 + $0x28] sm:$0xff]
    %v251 = vld [vmem:[%s2 + $0x30] sm:$0xff]
    %v252 = vld [vmem:[%s2 + $0x38] sm:$0xff]
    %v253 = vld [vmem:[%s2 + $0x40] sm:$0xff]
    %v254 = vld [vmem:[%s2 + $0x48] sm:$0xff]
    %v255 = vld [vmem:[%s2 + $0x50] sm:$0xff]
    %v256 = vld [vmem:[%s2 + $0x58] sm:$0xff]
    %v257 = vld [vmem:[%s2 + $0x60] sm:$0xff]
    %v258 = vld [vmem:[%s2 + $0x68] sm:$0xff]
    %v259 = vld [vmem:[%s2 + $0x70] sm:$0xff]
    %v260 = vld [vmem:[%s2 + $0x78] sm:$0xff]
    %261 = vmatprep.subr.mxu0 0.0
    %262 = vmatpush1.msra.mxu0 %v245
    %263 = vmatprep.subr.mxu0 0.0
    %264 = vmatpush1.msra.mxu0 %v246
    %265 = vmatprep.subr.mxu0 0.0
    %266 = vmatpush1.msra.mxu0 %v247
    %267 = vmatprep.subr.mxu0 0.0
    %268 = vmatpush1.msra.mxu0 %v248
    %269 = vmatprep.subr.mxu0 0.0
    %270 = vmatpush1.msra.mxu0 %v249
    %271 = vmatprep.subr.mxu0 0.0
    %272 = vmatpush1.msra.mxu0 %v250
    %273 = vmatprep.subr.mxu0 0.0
    %274 = vmatpush1.msra.mxu0 %v251
    %275 = vmatprep.subr.mxu0 0.0
    %276 = vmatpush1.msra.mxu0 %v252
    %277 = vmatprep.subr.mxu0 0.0
    %278 = vmatpush1.msra.mxu0 %v253
    %279 = vmatprep.subr.mxu0 0.0
    %280 = vmatpush1.msra.mxu0 %v254
    %281 = vmatprep.subr.mxu0 0.0
    %282 = vmatpush1.msra.mxu0 %v255
    %283 = vmatprep.subr.mxu0 0.0
    %284 = vmatpush1.msra.mxu0 %v256
    %285 = vmatprep.subr.mxu0 0.0
    %286 = vmatpush1.msra.mxu0 %v257
    %287 = vmatprep.subr.mxu0 0.0
    %288 = vmatpush1.msra.mxu0 %v258
    %289 = vmatprep.subr.mxu0 0.0
    %290 = vmatpush1.msra.mxu0 %v259
    %291 = vmatprep.subr.mxu0 0.0
    %292 = vmatpush1.msra.mxu0 %v260
    %293 = vmatprep.subr.mxu0 0.0
    %294 = vmatpush1.msra.mxu0 0.0
    %295 = vmatprep.subr.mxu0 0.0
    %296 = vmatpush1.msra.mxu0 0.0
    %297 = vmatprep.subr.mxu0 0.0
    %298 = vmatpush1.msra.mxu0 0.0
    %299 = vmatprep.subr.mxu0 0.0
    %300 = vmatpush1.msra.mxu0 0.0
    %301 = vmatprep.subr.mxu0 0.0
    %302 = vmatpush1.msra.mxu0 0.0
    %303 = vmatprep.subr.mxu0 0.0
    %304 = vmatpush1.msra.mxu0 0.0
    %305 = vmatprep.subr.mxu0 0.0
    %306 = vmatpush1.msra.mxu0 0.0
    %307 = vmatprep.subr.mxu0 0.0
    %308 = vmatpush1.msra.mxu0 0.0
    %309 = vmatprep.subr.mxu0 0.0
    %310 = vmatpush1.msra.mxu0 0.0
    %311 = vmatprep.subr.mxu0 0.0
    %312 = vmatpush1.msra.mxu0 0.0
    %313 = vmatprep.subr.mxu0 0.0
    %314 = vmatpush1.msra.mxu0 0.0
    %315 = vmatprep.subr.mxu0 0.0
    %316 = vmatpush1.msra.mxu0 0.0
    %317 = vmatprep.subr.mxu0 0.0
    %318 = vmatpush1.msra.mxu0 0.0
    %319 = vmatprep.subr.mxu0 0.0
    %320 = vmatpush1.msra.mxu0 0.0
    %321 = vmatprep.subr.mxu0 0.0
    %322 = vmatpush1.msra.mxu0 0.0
    %323 = vmatprep.subr.mxu0 0.0
    %324 = vmatpush1.msra.mxu0 0.0
    %325 = vmatprep.mubr.f32.mxu0 0.0
    %326 = vmatmul.mubr.f32.gmra.mrb[0].mxu0 %v151
    %v327 = vpop.f32.mrb[0].mxu0
    %v328 = vadd.f32 0.0, %v327
    %v329 = vpop.f32.mrb[0].mxu0
    %330 = vmatprep.mubr.f32.mxu0 0.0
    %331 = vmatmul.mubr.f32.gmra.mrb[0].mxu0 %v156
    %v332 = vpop.f32.mrb[0].mxu0
    %v333 = vadd.f32 0.0, %v332
    %v334 = vpop.f32.mrb[0].mxu0
    %335 = vmatprep.mubr.f32.mxu0 0.0
    %336 = vmatmul.mubr.f32.gmra.mrb[0].mxu0 %v161
    %v337 = vpop.f32.mrb[0].mxu0
    %v338 = vadd.f32 0.0, %v337
    %v339 = vpop.f32.mrb[0].mxu0
    %340 = vmatprep.mubr.f32.mxu0 0.0
    %341 = vmatmul.mubr.f32.gmra.mrb[0].mxu0 %v166
    %v342 = vpop.f32.mrb[0].mxu0
    %v343 = vadd.f32 0.0, %v342
    %v344 = vpop.f32.mrb[0].mxu0
    %345 = vmatprep.mubr.f32.mxu0 0.0
    %346 = vmatmul.mubr.f32.gmra.mrb[0].mxu0 %v171
    %v347 = vpop.f32.mrb[0].mxu0
    %v348 = vadd.f32 0.0, %v347
    %v349 = vpop.f32.mrb[0].mxu0
    %350 = vmatprep.mubr.f32.mxu0 0.0
    %351 = vmatmul.mubr.f32.gmra.mrb[0].mxu0 %v176
    %v352 = vpop.f32.mrb[0].mxu0
    %v353 = vadd.f32 0.0, %v352
    %v354 = vpop.f32.mrb[0].mxu0
    %355 = vmatprep.mubr.f32.mxu0 0.0
    %356 = vmatmul.mubr.f32.gmra.mrb[0].mxu0 %v181
    %v357 = vpop.f32.mrb[0].mxu0
    %v358 = vadd.f32 0.0, %v357
    %v359 = vpop.f32.mrb[0].mxu0
    %360 = vmatprep.mubr.f32.mxu0 0.0
    %361 = vmatmul.mubr.f32.gmra.mrb[0].mxu0 %v186
    %v362 = vpop.f32.mrb[0].mxu0
    %v363 = vadd.f32 0.0, %v362
    %v364 = vpop.f32.mrb[0].mxu0
    %365 = vmatprep.mubr.f32.mxu0 0.0
    %366 = vmatmul.mubr.f32.gmra.mrb[0].mxu0 %v191
    %v367 = vpop.f32.mrb[0].mxu0
    %v368 = vadd.f32 0.0, %v367
    %v369 = vpop.f32.mrb[0].mxu0
    %370 = vmatprep.mubr.f32.mxu0 0.0
    %371 = vmatmul.mubr.f32.gmra.mrb[0].mxu0 %v196
    %v372 = vpop.f32.mrb[0].mxu0
    %v373 = vadd.f32 0.0, %v372
    %v374 = vpop.f32.mrb[0].mxu0
    %375 = vmatprep.mubr.f32.mxu0 0.0
    %376 = vmatmul.mubr.f32.gmra.mrb[0].mxu0 %v201
    %v377 = vpop.f32.mrb[0].mxu0
    %v378 = vadd.f32 0.0, %v377
    %v379 = vpop.f32.mrb[0].mxu0
    %380 = vmatprep.mubr.f32.mxu0 0.0
    %381 = vmatmul.mubr.f32.gmra.mrb[0].mxu0 %v206
    %v382 = vpop.f32.mrb[0].mxu0
    %v383 = vadd.f32 0.0, %v382
    %v384 = vpop.f32.mrb[0].mxu0
    %385 = vmatprep.mubr.f32.mxu0 0.0
    %386 = vmatmul.mubr.f32.gmra.mrb[0].mxu0 %v211
    %v387 = vpop.f32.mrb[0].mxu0
    %v388 = vadd.f32 0.0, %v387
    %v389 = vpop.f32.mrb[0].mxu0
    %390 = vmatprep.mubr.f32.mxu0 0.0
    %391 = vmatmul.mubr.f32.gmra.mrb[0].mxu0 %v216
    %v392 = vpop.f32.mrb[0].mxu0
    %v393 = vadd.f32 0.0, %v392
    %v394 = vpop.f32.mrb[0].mxu0
    %395 = vmatprep.mubr.f32.mxu0 0.0
    %396 = vmatmul.mubr.f32.gmra.mrb[0].mxu0 %v221
    %v397 = vpop.f32.mrb[0].mxu0
    %v398 = vadd.f32 0.0, %v397
    %v399 = vpop.f32.mrb[0].mxu0
    %400 = vmatprep.mubr.f32.mxu0 0.0
    %401 = vmatmul.mubr.f32.gmra.mrb[0].mxu0 %v226
    %v402 = vpop.f32.mrb[0].mxu0
    %v403 = vadd.f32 0.0, %v402
    %v404 = vpop.f32.mrb[0].mxu0
    %405 = vdwg.mxu0
    %vm406 = vcmask 15360
    %407 = vst.msk [vmem:[%s4] sm:$0xff] %vm406, %v328
    %408 = vst.msk [vmem:[%s4 + $0x8] sm:$0xff] %vm406, %v333
    %409 = vst.msk [vmem:[%s4 + $0x10] sm:$0xff] %vm406, %v338
    %410 = vst.msk [vmem:[%s4 + $0x18] sm:$0xff] %vm406, %v343
    %411 = vst.msk [vmem:[%s4 + $0x20] sm:$0xff] %vm406, %v348
    %412 = vst.msk [vmem:[%s4 + $0x28] sm:$0xff] %vm406, %v353
    %413 = vst.msk [vmem:[%s4 + $0x30] sm:$0xff] %vm406, %v358
    %414 = vst.msk [vmem:[%s4 + $0x38] sm:$0xff] %vm406, %v363
    %415 = vst.msk [vmem:[%s4 + $0x40] sm:$0xff] %vm406, %v368
    %416 = vst.msk [vmem:[%s4 + $0x48] sm:$0xff] %vm406, %v373
    %417 = vst.msk [vmem:[%s4 + $0x50] sm:$0xff] %vm406, %v378
    %418 = vst.msk [vmem:[%s4 + $0x58] sm:$0xff] %vm406, %v383
    %419 = vst.msk [vmem:[%s4 + $0x60] sm:$0xff] %vm406, %v388
    %420 = vst.msk [vmem:[%s4 + $0x68] sm:$0xff] %vm406, %v393
    %421 = vst.msk [vmem:[%s4 + $0x70] sm:$0xff] %vm406, %v398
    %422 = vst.msk [vmem:[%s4 + $0x78] sm:$0xff] %vm406, %v403
    // Predicated region
    $region14: #{tpu_custom_call.1} parent=1 // pred_check
      _
    $region15: #{tpu_custom_call.1} parent=1 // pred_check_branch
      %424 = sbr.rel (0) target = $region17
    $region16: #{tpu_custom_call.1} parent=1 // pred_region
      %s426 = ssub.s32 2048, 2048
      %427 = vsyncadd [#allocation3], %s426
      %s428 = sshll.u32 [#allocation2], 4
      %s429 = int_to_ptr.vmem [resolvable:$true] %s428
      %434 = dma.vmem_to_hbm [thread:$0]  %s429, 2048, %s3, [#allocation3], 128, 128, 8
    $region17: #{tpu_custom_call.1} parent=1 // pred_fallthru
      _
    // Predicated region
    $region18: #{tpu_custom_call.1} parent=1 // pred_check
      _
    $region19: #{tpu_custom_call.1} parent=1 // pred_check_branch
      %436 = sbr.rel (0) target = $region21
    $region20: #{tpu_custom_call.1} parent=1 // pred_region
      _
    $region21: #{tpu_custom_call.1} parent=1 // pred_fallthru
      _
    // Predicated region
    $region22: #{tpu_custom_call.1} parent=1 // pred_check
      _
    $region23: #{tpu_custom_call.1} parent=1 // pred_check_branch
      %438 = sbr.rel (0) target = $region25
    $region24: #{tpu_custom_call.1} parent=1 // pred_region
      %439 = dma.done [#allocation3], 2048
    $region25: #{tpu_custom_call.1} parent=1 // pred_fallthru
      _
    // Predicated region
    $region26: #{tpu_custom_call.1} parent=1 // pred_check
      _
    $region27: #{tpu_custom_call.1} parent=1 // pred_check_branch
      %441 = sbr.rel (0) target = $region29
    $region28: #{tpu_custom_call.1} parent=1 // pred_region
      _
    $region29: #{tpu_custom_call.1} parent=1 // pred_fallthru
      _
    %442 = vsyncpa [#allocation3], 1

</llo_original>
